<compile_context>
chip_gen: v7x
topology: tpu7x:2x2x1
jax: 0.10.0
libtpu: 0.0.40
codegen_flags: <defaults>
</compile_context>

<pallas_src>
import jax
import jax.numpy as jnp
from jax.experimental import pallas as pl
from jax.experimental.pallas import tpu as pltpu

LANE = 128


def _round_up(x, m):
    return (x + m - 1) // m * m


def _sublane_multiple(*dtypes):
    """Minimum second-to-last-dim multiple for the given dtypes (sublane packing)."""
    m = 8
    for dt in dtypes:
        m = max(m, 8 * (4 // jnp.dtype(dt).itemsize))  # f32->8, bf16->16, u8->32
    return m


def _choose_tiles(rows, cols, itemsize, sub, target_bytes):
    """Pick (row_tile, lane_tile): always (sub, 128)-aligned, capped by a byte budget."""
    max_elems = max(sub * LANE, target_bytes // itemsize)
    # Lane (last-dim) tile: multiple of 128 for dense stores, as wide as the budget
    # allows, capped by the rounded-up array extent (edges masked by Pallas).
    lane_cap = max(LANE, (max_elems // sub) // LANE * LANE)
    lane_tile = min(_round_up(cols, LANE), lane_cap)
    # Row (second-to-last) tile: multiple of `sub`, fill the remaining budget.
    row_cap = max(sub, (max_elems // lane_tile) // sub * sub)
    row_tile = min(_round_up(rows, sub), row_cap)
    # v7x megacore: if the whole array fits in one block but holds more than one
    # minimal (sub, 128) tile, split an axis so both TensorCores get a share.
    if _round_up(rows, sub) <= row_tile and _round_up(cols, LANE) <= lane_tile:
        if _round_up(rows, sub) > sub:
            row_tile = _round_up(-(-rows // 2), sub)
        elif _round_up(cols, LANE) > LANE:
            lane_tile = _round_up(-(-cols // 2), LANE)
    return row_tile, lane_tile


def _normalize_kernel(scale_ref, bias_ref, x_ref, o_ref):
    # scale_ref / bias_ref: full (rows_pad, 1) columns, VMEM-resident across the grid
    # x_ref / o_ref:        (R, L) tiles
    r = x_ref.shape[0]
    start = pl.multiple_of(pl.program_id(0) * r, r)
    s = scale_ref[pl.ds(start, r), :]          # (R, 1) -> broadcast over lanes
    b = bias_ref[pl.ds(start, r), :]
    o_ref[...] = (x_ref[...].astype(jnp.float32) * s + b).astype(o_ref.dtype)


def normalize(x, mean, std, *, out_dtype=None, target_block_bytes=4 << 20,
              donate_input=False):
    """(x / 255 - mean[c]) / std[c] over an NCHW tensor.

    x may be float32 or uint8 (values in [0, 255]); compute is f32 in-kernel.
    out_dtype defaults to float32; pass jnp.bfloat16 to halve output HBM traffic.
    """
    N, C, H, W = x.shape
    in_dtype = jnp.dtype(x.dtype)
    out_dtype = jnp.dtype(out_dtype or jnp.float32)

    mean = jnp.asarray(mean, jnp.float32).reshape(C)
    std = jnp.asarray(std, jnp.float32).reshape(C)
    # Fold (x/255 - mean)/std  ->  x*scale + bias   (per channel, computed once)
    scale = 1.0 / (255.0 * std)
    bias = -mean / std

    rows, cols = N * C, H * W
    x2 = x.reshape(rows, cols)                 # free collapse for contiguous NCHW

    sub = _sublane_multiple(in_dtype, out_dtype)
    budget_itemsize = max(in_dtype.itemsize, out_dtype.itemsize)
    R, L = _choose_tiles(rows, cols, budget_itemsize, sub, target_block_bytes)
    grid = (pl.cdiv(rows, R), pl.cdiv(cols, L))

    # Per-row (= per (n, c)) scale/bias columns, padded to a whole number of row
    # tiles so the in-kernel pl.ds slice never goes out of bounds. Tiny (N*C f32).
    rows_pad = grid[0] * R
    scale_rows = jnp.tile(scale, N)
    bias_rows = jnp.tile(bias, N)
    if rows_pad > rows:
        pad = rows_pad - rows
        scale_rows = jnp.concatenate([scale_rows, jnp.ones((pad,), jnp.float32)])
        bias_rows = jnp.concatenate([bias_rows, jnp.zeros((pad,), jnp.float32)])
    scale_rows = scale_rows.reshape(rows_pad, 1)
    bias_rows = bias_rows.reshape(rows_pad, 1)

    grid_spec = pltpu.PrefetchScalarGridSpec(
        num_scalar_prefetch=0,
        grid=grid,
        in_specs=[
            pl.BlockSpec((rows_pad, 1), lambda i, j: (0, 0)),   # scale (resident)
            pl.BlockSpec((rows_pad, 1), lambda i, j: (0, 0)),   # bias  (resident)
            pl.BlockSpec((R, L), lambda i, j: (i, j)),          # x
        ],
        out_specs=pl.BlockSpec((R, L), lambda i, j: (i, j)),
    )

    # Scoped-VMEM limit from the actual double-buffered live set (+25% headroom),
    # clamped to stay well inside v7x's 64 MiB physical VMEM.
    block_bytes = R * L * (in_dtype.itemsize + out_dtype.itemsize)
    live_bytes = 2 * block_bytes + 4 * rows_pad * 4
    vmem_limit = int(min(48 << 20, max(32 << 20, live_bytes * 5 // 4)))

    cost = pl.CostEstimate(
        flops=2 * rows * cols,
        transcendentals=0,
        bytes_accessed=rows * cols * (in_dtype.itemsize + out_dtype.itemsize)
        + 2 * rows_pad * 4,
    )

    aliases = {}
    if donate_input and in_dtype == out_dtype:
        aliases = {2: 0}   # donate x's HBM buffer to the output

    out2 = pl.pallas_call(
        _normalize_kernel,
        out_shape=jax.ShapeDtypeStruct((rows, cols), out_dtype),
        grid_spec=grid_spec,
        compiler_params=pltpu.CompilerParams(
            dimension_semantics=("parallel", "parallel"),
            vmem_limit_bytes=vmem_limit,
        ),
        cost_estimate=cost,
        input_output_aliases=aliases,
    )(scale_rows, bias_rows, x2)

    return out2.reshape(N, C, H, W)


if __name__ == "__main__":
    key = jax.random.PRNGKey(0)
    N, C, H, W = 2, 3, 16, 16   # module reshapes mean/std to (1, 3, 1, 1) -> C must be 3

    # Deterministic "image-like" input in [0, 255]
    x = jax.random.uniform(key, (N, C, H, W), dtype=jnp.float32,
                           minval=0.0, maxval=255.0)
    mean = jnp.array([0.485, 0.456, 0.406], dtype=jnp.float32)
    std = jnp.array([0.229, 0.224, 0.225], dtype=jnp.float32)

    # Path 1: float32 in / float32 out (matches the PyTorch module exactly)
    out = jax.block_until_ready(normalize(x, mean, std))
    ref = (x / 255.0 - mean.reshape(1, 3, 1, 1)) / std.reshape(1, 3, 1, 1)
    assert out.shape == (N, C, H, W) and out.dtype == jnp.float32
    assert jnp.allclose(out, ref, atol=1e-5, rtol=1e-5)

    # Path 2: narrow I/O — uint8 input / bfloat16 output (~2.5x less HBM traffic)
    x_u8 = jnp.floor(x).astype(jnp.uint8)
    out_bf16 = jax.block_until_ready(normalize(x_u8, mean, std, out_dtype=jnp.bfloat16))
    ref_u8 = (x_u8.astype(jnp.float32) / 255.0 - mean.reshape(1, 3, 1, 1)) \
        / std.reshape(1, 3, 1, 1)
    assert out_bf16.dtype == jnp.bfloat16
    assert jnp.allclose(out_bf16.astype(jnp.float32), ref_u8, atol=2e-2, rtol=0.0)

    print("KERNEL_OK")
</pallas_src>

<mosaic_0001>
module attributes {stable_mosaic.version = 11 : i64} {
  func.func @_normalize_kernel(%arg0: i32, %arg1: i32, %arg2: memref<8x1xf32, #tpu.memory_space<vmem>>, %arg3: memref<8x1xf32, #tpu.memory_space<vmem>>, %arg4: memref<8x128xf32, #tpu.memory_space<vmem>>, %arg5: memref<8x128xf32, #tpu.memory_space<vmem>>) attributes {dimension_semantics = [#tpu.dimension_semantics<parallel>, #tpu.dimension_semantics<parallel>], iteration_bounds = array<i64: 1, 2>, scalar_prefetch = 0 : i64, scratch_operands = 0 : i64, tpu.core_type = #tpu.core_type<tc>, window_params = [{pipeline_mode = #tpu.pipeline_mode<synchronous>, transform_indices = @transform_0, window_bounds = array<i64: 8, 1>}, {pipeline_mode = #tpu.pipeline_mode<synchronous>, transform_indices = @transform_1, window_bounds = array<i64: 8, 1>}, {transform_indices = @transform_2, window_bounds = array<i64: 8, 128>}, {transform_indices = @transform_3, window_bounds = array<i64: 8, 128>}]} {
    %c8_i32 = arith.constant 8 : i32
    %0 = arith.muli %arg0, %c8_i32 : i32
    %1 = tpu.assume_multiple %0, 8 : i32
    %2 = arith.index_cast %1 : i32 to index
    %c0 = arith.constant 0 : index
    %3 = vector.load %arg2[%2, %c0] : memref<8x1xf32, #tpu.memory_space<vmem>>, vector<8x1xf32>
    %4 = arith.index_cast %1 : i32 to index
    %c0_0 = arith.constant 0 : index
    %5 = vector.load %arg3[%4, %c0_0] : memref<8x1xf32, #tpu.memory_space<vmem>>, vector<8x1xf32>
    %c0_1 = arith.constant 0 : index
    %c0_2 = arith.constant 0 : index
    %6 = vector.load %arg4[%c0_1, %c0_2] : memref<8x128xf32, #tpu.memory_space<vmem>>, vector<8x128xf32>
    %7 = vector.broadcast %3 : vector<8x1xf32> to vector<8x128xf32>
    %8 = arith.mulf %6, %7 : vector<8x128xf32>
    %9 = vector.broadcast %5 : vector<8x1xf32> to vector<8x128xf32>
    %10 = arith.addf %8, %9 : vector<8x128xf32>
    %c0_3 = arith.constant 0 : index
    %c0_4 = arith.constant 0 : index
    %11 = vector.load %arg5[%c0_3, %c0_4] : memref<8x128xf32, #tpu.memory_space<vmem>>, vector<8x128xf32>
    tpu.vector_store %arg5[%c0_3, %c0_4], %10 {strides = array<i32>} : memref<8x128xf32, #tpu.memory_space<vmem>>, vector<8x128xf32>,
    return
  }
  func.func @transform_0(%arg0: i32, %arg1: i32) -> (i32, i32) {
    %c0_i32 = arith.constant 0 : i32
    %c0_i32_0 = arith.constant 0 : i32
    %c0_i32_1 = arith.constant 0 : i32
    return %c0_i32, %c0_i32_0 : i32, i32
  }
  func.func @transform_1(%arg0: i32, %arg1: i32) -> (i32, i32) {
    %c0_i32 = arith.constant 0 : i32
    %c0_i32_0 = arith.constant 0 : i32
    %c0_i32_1 = arith.constant 0 : i32
    return %c0_i32, %c0_i32_0 : i32, i32
  }
  func.func @transform_2(%arg0: i32, %arg1: i32) -> (i32, i32) {
    %c0_i32 = arith.constant 0 : i32
    return %arg0, %arg1 : i32, i32
  }
  func.func @transform_3(%arg0: i32, %arg1: i32) -> (i32, i32) {
    %c0_i32 = arith.constant 0 : i32
    return %arg0, %arg1 : i32, i32
  }
}

</mosaic_0001>

<llo_original>
// kernel: tpu_custom_call.1
$region0: #{tpu_custom_call.1}
  #allocation0 [shape = 'u32[]', space=smem, size = 0x4, offset = 0x4, fixed_abs, tag = 'smem constant byte address 0x4 - core index']
  #allocation1 [shape = 'u32[144,128]{1,0:T(1,128)}', space=vmem, size = 0x12000, scoped, tag = 'internal scratch']
  %s0 = inlined_call_operand.vmem [shape: f32[8,1], index: 0, kind: input, shape index: {}]
  %s1 = inlined_call_operand.vmem [shape: f32[8,1], index: 1, kind: input, shape index: {}]
  %s2 = inlined_call_operand.vmem [shape: f32[6,256], index: 2, kind: input, shape index: {}]
  %s3 = inlined_call_operand.hbm [shape: f32[6,256], index: 3, kind: output, shape index: {}]
  %s4 = sld [smem:[#allocation0]]
  $region45: #{tpu_custom_call.1} parent=0
    _
  %s6 = ssub.s32 1, %s4
  %s7 = scalar_select 0, %s6, %s4
  $region1: #{tpu_custom_call.1} parent=0
    #allocation2 [shape = 'u8[8192]{0}', space=vmem, size = 0x2000, scoped, tag = 'output window, operand 0']
    #allocation3 [shape = 's32[2]{0}', space=sflag, size = 0x8, scoped, tag = 'scoped memory for tpu_custom_call.1']
    %8 = vsyncpa [#allocation3], 0
    %s9 = scalar_lea.sflag [#allocation3], 1
    %10 = vsyncpa %s9, 0
    loop: start=0, step=1, limit=4
    $region2: #{tpu_custom_call.1} parent=1 // loop_pre_header
      _
    $region3: #{tpu_custom_call.1} parent=1 // loop_header
      %s12 = sphi 0, %s16
      %p13 = scmp.ge.s32.totalorder %s12, 4
      %s19 = sphi 0, %s31
      %s20 = sphi 0, %s27
      %s21 = sphi 0, %s19
      %s22 = sphi 0, %s20
      %s23 = sphi 0, %s21
      %s24 = sphi 0, %s22
      %s32 = sphi 0, %s32
      %s34 = sphi 0, %s32
      %s35 = sphi 0, %s34
      %s49 = sphi 0, %s35
      %s53 = sphi 0, %s53
      %s55 = sphi 0, %s53
      %s56 = sphi 0, %s55
      %s70 = sphi 0, %s56
      %s78 = sphi 0, %s80
      %s81 = sphi 0, %s78
      %s82 = sphi 0, %s81
      %s98 = sphi 0, %s82
      %s106 = sphi 0, %s108
      %s109 = sphi 0, %s106
      %s110 = sphi 0, %s109
      %s126 = sphi 0, %s110
    $region4: #{tpu_custom_call.1} parent=1 // loop_header_branch
      %15 = sbr.rel (%p13) target = $region8
    $region5: #{tpu_custom_call.1} parent=1 // loop_body
      %s17 = ssub.s32 %s12, 1
      %s18 = ssub.s32 %s12, 2
      %s25 = sadd.s32 1, %s20
      %p26 = scmp.ge.s32.totalorder %s25, 2
      %s27 = scalar_select %p26, 0, %s25
      %s28 = sadd.s32 1, %s19
      %s29 = scalar_select %p26, %s28, %s19
      %p30 = scmp.ge.s32.totalorder %s29, 1
      %s31 = scalar_select %p30, 0, %s29
      %s33 = sadd.s32 %s32, 1
      %p36 = scmp.eq.s32.totalorder %s12, 1
      %p37 = scmp.ne.s32.totalorder %s32, %s34
      %p38 = scmp.eq.s32.totalorder %s12, 0
      %p39 = por %p37, %p38
      %p40 = scmp.ne.s32.totalorder %s32, %s34
      %p41 = scmp.eq.s32.totalorder %s17, 1
      %p42 = por %p40, %p41
      %p43 = scmp.ne.s32.totalorder %s34, %s35
      %p44 = scmp.eq.s32.totalorder %s17, 0
      %p45 = por %p43, %p44
      %p46 = scmp.ne.s32.totalorder %s34, %s35
      %p47 = scmp.eq.s32.totalorder %s18, 1
      %p48 = por %p46, %p47
      %p50 = scmp.ne.s32.totalorder %s35, %s49
      %p51 = scmp.eq.s32.totalorder %s18, 0
      %p52 = por %p50, %p51
      %s54 = sadd.s32 %s53, 1
      %p57 = scmp.eq.s32.totalorder %s12, 1
      %p58 = scmp.ne.s32.totalorder %s53, %s55
      %p59 = scmp.eq.s32.totalorder %s12, 0
      %p60 = por %p58, %p59
      %p61 = scmp.ne.s32.totalorder %s53, %s55
      %p62 = scmp.eq.s32.totalorder %s17, 1
      %p63 = por %p61, %p62
      %p64 = scmp.ne.s32.totalorder %s55, %s56
      %p65 = scmp.eq.s32.totalorder %s17, 0
      %p66 = por %p64, %p65
      %p67 = scmp.ne.s32.totalorder %s55, %s56
      %p68 = scmp.eq.s32.totalorder %s18, 1
      %p69 = por %p67, %p68
      %p71 = scmp.ne.s32.totalorder %s56, %s70
      %p72 = scmp.eq.s32.totalorder %s18, 0
      %p73 = por %p71, %p72
      %s74 = ssub.s32 %s19, %s31
      %s75 = ssub.s32 %s20, %s27
      %s76 = sor.u32 %s74, %s75
      %p77 = scmp.eq.s32.totalorder %s76, 0
      %s79 = sadd.s32 %s78, 1
      %s80 = scalar_select %p77, %s78, %s79
      %p83 = pneg %p77
      %p84 = scmp.eq.s32.totalorder %s12, 1
      %p85 = por %p83, %p84
      %p86 = scmp.ne.s32.totalorder %s78, %s81
      %p87 = scmp.eq.s32.totalorder %s12, 0
      %p88 = por %p86, %p87
      %p89 = scmp.ne.s32.totalorder %s78, %s81
      %p90 = scmp.eq.s32.totalorder %s17, 1
      %p91 = por %p89, %p90
      %p92 = scmp.ne.s32.totalorder %s81, %s82
      %p93 = scmp.eq.s32.totalorder %s17, 0
      %p94 = por %p92, %p93
      %p95 = scmp.ne.s32.totalorder %s81, %s82
      %p96 = scmp.eq.s32.totalorder %s18, 1
      %p97 = por %p95, %p96
      %p99 = scmp.ne.s32.totalorder %s82, %s98
      %p100 = scmp.eq.s32.totalorder %s18, 0
      %p101 = por %p99, %p100
      %s102 = ssub.s32 %s19, %s31
      %s103 = ssub.s32 %s20, %s27
      %s104 = sor.u32 %s102, %s103
      %p105 = scmp.eq.s32.totalorder %s104, 0
      %s107 = sadd.s32 %s106, 1
      %s108 = scalar_select %p105, %s106, %s107
      %p111 = pneg %p105
      %p112 = scmp.eq.s32.totalorder %s12, 1
      %p113 = por %p111, %p112
      %p114 = scmp.ne.s32.totalorder %s106, %s109
      %p115 = scmp.eq.s32.totalorder %s12, 0
      %p116 = por %p114, %p115
      %p117 = scmp.ne.s32.totalorder %s106, %s109
      %p118 = scmp.eq.s32.totalorder %s17, 1
      %p119 = por %p117, %p118
      %p120 = scmp.ne.s32.totalorder %s109, %s110
      %p121 = scmp.eq.s32.totalorder %s17, 0
      %p122 = por %p120, %p121
      %p123 = scmp.ne.s32.totalorder %s109, %s110
      %p124 = scmp.eq.s32.totalorder %s18, 1
      %p125 = por %p123, %p124
      %p127 = scmp.ne.s32.totalorder %s110, %s126
      %p128 = scmp.eq.s32.totalorder %s18, 0
      %p129 = por %p127, %p128
      %p130 = scmp.le.s32.totalorder 1, %s12
      %p131 = scmp.lt.s32.totalorder %s12, 3
      %p132 = pnand %p130, %p131
      %p133 = pneg %p132
      // Predicated region
      $region9: #{tpu_custom_call.1} parent=5 // pred_check
        _
      $region10: #{tpu_custom_call.1} parent=5 // pred_check_branch
        %135 = sbr.rel (%p132) target = $region12
      $region11: #{tpu_custom_call.1} parent=5 // pred_region
        %s136 = ssub.s32 %s12, 1
        // Predicated region
        $region13: #{tpu_custom_call.1} parent=11 // pred_check
          %p137 = pneg %p45
        $region14: #{tpu_custom_call.1} parent=11 // pred_check_branch
          %139 = sbr.rel (%p137) target = $region16
        $region15: #{tpu_custom_call.1} parent=11 // pred_region
          _
        $region16: #{tpu_custom_call.1} parent=11 // pred_fallthru
          _
        // Predicated region
        $region17: #{tpu_custom_call.1} parent=11 // pred_check
          %p140 = pneg %p66
        $region18: #{tpu_custom_call.1} parent=11 // pred_check_branch
          %142 = sbr.rel (%p140) target = $region20
        $region19: #{tpu_custom_call.1} parent=11 // pred_region
          _
        $region20: #{tpu_custom_call.1} parent=11 // pred_fallthru
          _
      $region12: #{tpu_custom_call.1} parent=5 // pred_fallthru
        _
      %p143 = scmp.lt.s32.totalorder %s12, 2
      // Predicated region
      $region21: #{tpu_custom_call.1} parent=5 // pred_check
        %p144 = pneg %p143
      $region22: #{tpu_custom_call.1} parent=5 // pred_check_branch
        %146 = sbr.rel (%p144) target = $region24
      $region23: #{tpu_custom_call.1} parent=5 // pred_region
        // Predicated region
        $region25: #{tpu_custom_call.1} parent=23 // pred_check
          %p147 = pneg %p88
        $region26: #{tpu_custom_call.1} parent=23 // pred_check_branch
          %149 = sbr.rel (%p147) target = $region28
        $region27: #{tpu_custom_call.1} parent=23 // pred_region
          %p150 = scmp.lt.s32.totalorder %s19, 0
          %s151 = scalar_select %p150, %s19, 0
          %p152 = scmp.lt.s32.totalorder %s20, 1
          %s153 = scalar_select %p152, %s20, 1
          %s154 = smul.addr %s151, 2
          %s155 = sadd.s32 %s153, %s154
          %s156 = smul.addr %s155, 8
          %s157 = scalar_lea.vmem %s2, %s156
        $region28: #{tpu_custom_call.1} parent=23 // pred_fallthru
          _
      $region24: #{tpu_custom_call.1} parent=5 // pred_fallthru
        _
      %p158 = scmp.le.s32.totalorder 1, %s12
      %p159 = scmp.lt.s32.totalorder %s12, 3
      %p160 = pnand %p158, %p159
      %p161 = pneg %p160
      // Predicated region
      $region29: #{tpu_custom_call.1} parent=5 // pred_check
        _
      $region30: #{tpu_custom_call.1} parent=5 // pred_check_branch
        %163 = sbr.rel (%p160) target = $region32
      $region31: #{tpu_custom_call.1} parent=5 // pred_region
        %s164 = ssub.s32 %s12, 1
        %p165 = pneg %p45
        %p166 = pneg %p42
        %p167 = pneg %p66
        %p168 = pneg %p63
        %p169 = scmp.lt.s32.totalorder %s21, 0
        %s170 = scalar_select %p169, %s21, 0
        %p171 = scmp.lt.s32.totalorder %s22, 1
        %s172 = scalar_select %p171, %s22, 1
        %s173 = smul.addr %s170, 2
        %s174 = sadd.s32 %s172, %s173
        %s175 = smul.addr %s174, 8
        %s176 = scalar_lea.vmem %s2, %s175
        %p177 = pneg %p94
        %p178 = pneg %p91
        %p179 = pneg %p122
        %p180 = pneg %p119
        %s181 = sand.u32 %s109, 1
        %s182 = scalar_lea.sflag [#allocation3], %s181
        %s183 = sand.u32 %s109, 1
        %s184 = smul.addr %s183, 8
        %s185 = scalar_lea.vmem [#allocation2], %s184
        %p186 = scmp.lt.s32.totalorder %s21, 0
        %s187 = scalar_select %p186, %s21, 0
        %p188 = scmp.lt.s32.totalorder %s22, 1
        %s189 = scalar_select %p188, %s22, 1
        %s190 = smul.addr %s187, 2
        %s191 = sadd.s32 %s189, %s190
        %s192 = smul.addr %s191, 8
        %s193 = scalar_lea.vmem %s2, %s192
        %s194 = smul.u32 %s21, 8
        %s195 = scalar_lea.vmem %s0, %s194
        %v196 = vld [vmem:[%s195] sm:$0xff]
        %s197 = scalar_lea.vmem %s1, %s194
        %v198 = vld [vmem:[%s197] sm:$0xff]
        %v199 = vld [vmem:[%s193] sm:$0xff]
        %201 = vset.pattern.permute.xlu0 0
        %202 = vperm.xlu0 %201, %v196
        %v203 = vpop.permute.xlu0 %202
        %v205 = vmul.f32 %v199, %v203
        %207 = vset.pattern.permute.xlu0 0
        %208 = vperm.xlu0 %207, %v198
        %v209 = vpop.permute.xlu0 %208
        %v211 = vadd.f32 %v205, %v209
        %212 = vst [vmem:[%s185] sm:$0xff] %v211
        %s213 = sand.u32 %s109, 1
        %s214 = scalar_lea.sflag [#allocation3], %s213
        %s215 = sand.u32 %s109, 1
        %s216 = smul.addr %s215, 8
        %s217 = scalar_lea.vmem [#allocation2], %s216
        // Predicated region
        $region33: #{tpu_custom_call.1} parent=31 // pred_check
          %p218 = pneg %p119
        $region34: #{tpu_custom_call.1} parent=31 // pred_check_branch
          %220 = sbr.rel (%p218) target = $region36
        $region35: #{tpu_custom_call.1} parent=31 // pred_region
          %s222 = ssub.s32 128, 128
          %223 = vsyncadd %s214, %s222
          %s224 = smul.addr %s21, 2
          %s225 = sadd.s32 %s22, %s224
          %s226 = smul.addr %s225, 128
          %s227 = scalar_lea.hbm %s3, %s226
          %s229 = sshll.u32 %s217, 4
          %s230 = int_to_ptr.vmem [resolvable:$true] %s229
          %232 = dma.vmem_to_hbm [thread:$0]  %s230, 128, %s227, %s214
        $region36: #{tpu_custom_call.1} parent=31 // pred_fallthru
          _
      $region32: #{tpu_custom_call.1} parent=5 // pred_fallthru
        _
      %p233 = scmp.le.s32.totalorder 2, %s12
      // Predicated region
      $region37: #{tpu_custom_call.1} parent=5 // pred_check
        %p234 = pneg %p233
      $region38: #{tpu_custom_call.1} parent=5 // pred_check_branch
        %236 = sbr.rel (%p234) target = $region40
      $region39: #{tpu_custom_call.1} parent=5 // pred_region
        %s237 = ssub.s32 %s12, 2
        // Predicated region
        $region41: #{tpu_custom_call.1} parent=39 // pred_check
          %p238 = pneg %p125
        $region42: #{tpu_custom_call.1} parent=39 // pred_check_branch
          %240 = sbr.rel (%p238) target = $region44
        $region43: #{tpu_custom_call.1} parent=39 // pred_region
          %s241 = sand.u32 %s110, 1
          %s242 = scalar_lea.sflag [#allocation3], %s241
          %s243 = sand.u32 %s110, 1
          %s244 = smul.addr %s243, 8
          %s245 = scalar_lea.vmem [#allocation2], %s244
          %246 = dma.done %s242, 128
        $region44: #{tpu_custom_call.1} parent=39 // pred_fallthru
          _
      $region40: #{tpu_custom_call.1} parent=5 // pred_fallthru
        _
    $region6: #{tpu_custom_call.1} parent=1 // loop_footer
      %s16 = sadd.s32 1, %s12
    $region7: #{tpu_custom_call.1} parent=1 // loop_footer_branch
      %11 = sbr.rel target = $region3
    $region8: #{tpu_custom_call.1} parent=1 // loop_exit
      _
    %247 = vsyncpa [#allocation3], 1
    %s248 = scalar_lea.sflag [#allocation3], 1
    %249 = vsyncpa %s248, 1

</llo_original>
